<compile_context>
chip_gen: v7x
topology: tpu7x:2x2x1
jax: 0.10.0
libtpu: 0.0.40
codegen_flags: <defaults>
</compile_context>

<pallas_src>
import functools

import jax
import jax.numpy as jnp
from jax.experimental import pallas as pl
from jax.experimental.pallas import tpu as pltpu


_LANE = 128     # vreg lane width: hidden dim padded to this for lane-dense vregs
_SUBLANE = 8    # f32 sublane width: batch tile must be a multiple of this


def _round_up(x, m):
    return (x + m - 1) // m * m


def _cdiv(a, b):
    return -(-a // b)


def _vmem_capacity_bytes():
    try:
        return int(pltpu.get_tpu_info().vmem_capacity_bytes)
    except Exception:
        return 64 * 2 ** 20   # conservative fallback (v7x per-TC VMEM)


_VMEM_CAPACITY = _vmem_capacity_bytes()
# ~80% usable: ~102 MiB on v5e/v6e (128 MiB physical), ~51 MiB on v7x (64 MiB).
_VMEM_USABLE = max(32 * 2 ** 20, int(_VMEM_CAPACITY * 0.8))


def _single_buffer_kwargs():
    # Weights/biases have constant index_maps across the grid -> a second
    # pipeline buffer is pure VMEM waste.  Capability-check the pipeline_mode
    # kwarg once at import (construction only, no compile) rather than a broad
    # try/except around the whole pallas_call.
    try:
        pl.BlockSpec((_SUBLANE, _LANE), lambda i: (0, 0), pipeline_mode=pl.Buffered(1))
        return {"pipeline_mode": pl.Buffered(1)}
    except Exception:
        return {}


_WEIGHT_SPEC_KWARGS = _single_buffer_kwargs()


def _mlp_kernel(x_ref, w1_ref, b1_ref, w2_ref, b2_ref, w3_ref, b3_ref, o_ref):
    """Fused Linear->ReLU->(Dropout=id)->Linear->ReLU->(Dropout=id)->Linear.

    bf16 MXU matmuls with f32 accumulation; bias-add and ReLU in f32 on the
    VPU.  The f32->bf16 cast of x happens here (hidden under the MXU) instead
    of a separate padding/cast pass in the wrapper.
    """
    x = x_ref[...].astype(jnp.bfloat16)
    # layer 1 + relu
    h = jnp.dot(x, w1_ref[...], preferred_element_type=jnp.float32)
    h = jnp.maximum(h + b1_ref[...], 0.0)
    # dropout: identity (eval mode)
    # layer 2 + relu
    h = jnp.dot(h.astype(jnp.bfloat16), w2_ref[...], preferred_element_type=jnp.float32)
    h = jnp.maximum(h + b2_ref[...], 0.0)
    # dropout: identity (eval mode)
    # layer 3
    out = jnp.dot(h.astype(jnp.bfloat16), w3_ref[...], preferred_element_type=jnp.float32)
    o_ref[...] = (out + b3_ref[...]).astype(o_ref.dtype)


def prepare_params(params):
    """One-time weight preparation (hoisted out of the per-forward path).

    * hidden dim zero-padded to a multiple of 128 (lane-dense intermediates;
      zero rows/cols are exact no-ops through matmul + bias + ReLU)
    * weights cast to bf16 (MXU operands), biases kept f32.
    """
    w1, b1 = params["w1"], params["b1"]
    w2, b2 = params["w2"], params["b2"]
    w3, b3 = params["w3"], params["b3"]
    in_f, hid = w1.shape
    out_f = w3.shape[1]
    hid_p = _round_up(hid, _LANE)

    w1p = jnp.zeros((in_f, hid_p), jnp.bfloat16).at[:, :hid].set(w1.astype(jnp.bfloat16))
    w2p = jnp.zeros((hid_p, hid_p), jnp.bfloat16).at[:hid, :hid].set(w2.astype(jnp.bfloat16))
    w3p = jnp.zeros((hid_p, out_f), jnp.bfloat16).at[:hid, :].set(w3.astype(jnp.bfloat16))
    b1p = jnp.zeros((1, hid_p), jnp.float32).at[:, :hid].set(
        b1.astype(jnp.float32).reshape(1, hid))
    b2p = jnp.zeros((1, hid_p), jnp.float32).at[:, :hid].set(
        b2.astype(jnp.float32).reshape(1, hid))
    b3p = b3.astype(jnp.float32).reshape(1, out_f)
    return {"w1": w1p, "b1": b1p, "w2": w2p, "b2": b2p, "w3": w3p, "b3": b3p}


@functools.partial(jax.jit, static_argnames=("block_b",))
def _forward_impl(x, w1, b1, w2, b2, w3, b3, *, block_b):
    B, in_f = x.shape
    hid_p = w1.shape[1]
    out_f = w3.shape[1]

    w_bufs = 1 if _WEIGHT_SPEC_KWARGS else 2
    w_bytes = (in_f * hid_p + hid_p * hid_p + hid_p * out_f) * 2
    b_bytes = (2 * hid_p + out_f) * 4

    def vmem_est(bb):
        return (w_bufs * (w_bytes + b_bytes)
                + 2 * bb * in_f * 4          # double-buffered f32 x tiles
                + 2 * bb * out_f * 4         # double-buffered f32 out tiles
                + 2 * bb * hid_p * 4)        # f32 intermediates / slack

    # Batch tile: >= 2 grid steps when the batch allows it (v7x has 2 TCs, the
    # "parallel" axis shards across them; extra steps cost ~0.35 us each on
    # single-TC chips).  Tile chosen to minimize batch padding, then shrunk if
    # the VMEM estimate would exceed the usable budget.
    min_steps = 2 if B >= 2 * _SUBLANE else 1
    steps = max(min_steps, _cdiv(B, block_b))
    bb = _round_up(_cdiv(B, steps), _SUBLANE)
    while bb > _SUBLANE and vmem_est(bb) > _VMEM_USABLE:
        bb = _round_up(max(_SUBLANE, bb // 2), _SUBLANE)
    steps = _cdiv(B, bb)
    B_p = steps * bb

    # Only pad batch rows when the tile does not divide the batch (zero rows
    # produce zero output rows which are sliced off below).
    xp = x if B_p == B else jnp.pad(x, ((0, B_p - B), (0, 0)))

    in_specs = [
        pl.BlockSpec((bb, in_f), lambda i: (i, 0)),                              # x tile
        pl.BlockSpec((in_f, hid_p), lambda i: (0, 0), **_WEIGHT_SPEC_KWARGS),    # w1
        pl.BlockSpec((1, hid_p), lambda i: (0, 0), **_WEIGHT_SPEC_KWARGS),       # b1
        pl.BlockSpec((hid_p, hid_p), lambda i: (0, 0), **_WEIGHT_SPEC_KWARGS),   # w2
        pl.BlockSpec((1, hid_p), lambda i: (0, 0), **_WEIGHT_SPEC_KWARGS),       # b2
        pl.BlockSpec((hid_p, out_f), lambda i: (0, 0), **_WEIGHT_SPEC_KWARGS),   # w3
        pl.BlockSpec((1, out_f), lambda i: (0, 0), **_WEIGHT_SPEC_KWARGS),       # b3
    ]
    out_spec = pl.BlockSpec((bb, out_f), lambda i: (i, 0))

    est = vmem_est(bb)
    vmem_limit = int(min(_VMEM_USABLE, max(32 * 2 ** 20, 2 * est)))
    flops = 2 * B_p * (in_f * hid_p + hid_p * hid_p + hid_p * out_f)
    bytes_accessed = B_p * in_f * 4 + w_bytes + b_bytes + B_p * out_f * 4

    out = pl.pallas_call(
        _mlp_kernel,
        out_shape=jax.ShapeDtypeStruct((B_p, out_f), jnp.float32),
        grid_spec=pltpu.PrefetchScalarGridSpec(
            num_scalar_prefetch=0,
            grid=(steps,),
            in_specs=in_specs,
            out_specs=out_spec,
        ),
        compiler_params=pltpu.CompilerParams(
            dimension_semantics=("parallel",),
            vmem_limit_bytes=vmem_limit,
        ),
        cost_estimate=pl.CostEstimate(
            flops=flops, transcendentals=0, bytes_accessed=bytes_accessed),
    )(xp, w1, b1, w2, b2, w3, b3)

    return out if B_p == B else out[:B]


def backbone_forward(x, prepared_params, block_b=512):
    """x: [B, in_features] f32.  prepared_params: output of prepare_params()
    (weights stored pre-transposed [fan_in, fan_out], padded, bf16)."""
    p = prepared_params
    return _forward_impl(x, p["w1"], p["b1"], p["w2"], p["b2"], p["w3"], p["b3"],
                         block_b=block_b)


def init_params(key, in_features, hidden_dimensions, out_features):
    """Deterministic init mimicking nn.Linear's U(-1/sqrt(fan_in), 1/sqrt(fan_in))."""
    ks = jax.random.split(key, 6)

    def linear(kw, kb, fan_in, fan_out):
        bound = 1.0 / jnp.sqrt(jnp.float32(fan_in))
        w = jax.random.uniform(kw, (fan_in, fan_out), jnp.float32, -bound, bound)
        b = jax.random.uniform(kb, (1, fan_out), jnp.float32, -bound, bound)
        return w, b

    w1, b1 = linear(ks[0], ks[1], in_features, hidden_dimensions)
    w2, b2 = linear(ks[2], ks[3], hidden_dimensions, hidden_dimensions)
    w3, b3 = linear(ks[4], ks[5], hidden_dimensions, out_features)
    return {"w1": w1, "b1": b1, "w2": w2, "b2": b2, "w3": w3, "b3": b3}


def _reference(x, p):
    # Same bf16-operand / f32-accumulate arithmetic as the kernel.
    f = lambda a: a.astype(jnp.bfloat16)
    h = jnp.dot(f(x), f(p["w1"]), preferred_element_type=jnp.float32) + p["b1"]
    h = jnp.maximum(h, 0.0)
    h = jnp.dot(f(h), f(p["w2"]), preferred_element_type=jnp.float32) + p["b2"]
    h = jnp.maximum(h, 0.0)
    return jnp.dot(f(h), f(p["w3"]), preferred_element_type=jnp.float32) + p["b3"]


if __name__ == "__main__":
    key = jax.random.PRNGKey(0)
    k_x, k_p, k_x2 = jax.random.split(key, 3)

    batch = 8
    in_features = 16
    hidden_dimensions = 32
    out_features = 8

    x = jax.random.normal(k_x, (batch, in_features), jnp.float32)
    params = init_params(k_p, in_features, hidden_dimensions, out_features)
    prepared = prepare_params(params)   # one-time padding + bf16 cast

    out = backbone_forward(x, prepared)
    out = jax.block_until_ready(out)
    ref = _reference(x, params)
    assert out.shape == (batch, out_features)
    assert jnp.allclose(out, ref, atol=1e-2, rtol=1e-2), "mismatch vs reference"

    # Second check: batch not a multiple of the tile -> exercises the
    # multi-step grid (2 steps, sharded across TCs on v7x) and batch padding.
    x2 = jax.random.normal(k_x2, (260, in_features), jnp.float32)
    out2 = jax.block_until_ready(backbone_forward(x2, prepared))
    ref2 = _reference(x2, params)
    assert out2.shape == (260, out_features)
    assert jnp.allclose(out2, ref2, atol=1e-2, rtol=1e-2), "mismatch (tiled) vs reference"

    print("KERNEL_OK")
</pallas_src>

<mosaic_0001>
module attributes {stable_mosaic.version = 11 : i64} {
  func.func @_mlp_kernel(%arg0: i32, %arg1: memref<8x16xf32, #tpu.memory_space<vmem>>, %arg2: memref<16x128xbf16, #tpu.memory_space<vmem>>, %arg3: memref<1x128xf32, #tpu.memory_space<vmem>>, %arg4: memref<128x128xbf16, #tpu.memory_space<vmem>>, %arg5: memref<1x128xf32, #tpu.memory_space<vmem>>, %arg6: memref<128x8xbf16, #tpu.memory_space<vmem>>, %arg7: memref<1x8xf32, #tpu.memory_space<vmem>>, %arg8: memref<8x8xf32, #tpu.memory_space<vmem>>) attributes {dimension_semantics = [#tpu.dimension_semantics<parallel>], iteration_bounds = array<i64: 1>, scalar_prefetch = 0 : i64, scratch_operands = 0 : i64, tpu.core_type = #tpu.core_type<tc>, window_params = [{transform_indices = @transform_0, window_bounds = array<i64: 8, 16>}, {pipeline_mode = #tpu.pipeline_mode<synchronous>, transform_indices = @transform_1, window_bounds = array<i64: 16, 128>}, {pipeline_mode = #tpu.pipeline_mode<synchronous>, transform_indices = @transform_2, window_bounds = array<i64: 1, 128>}, {pipeline_mode = #tpu.pipeline_mode<synchronous>, transform_indices = @transform_3, window_bounds = array<i64: 128, 128>}, {pipeline_mode = #tpu.pipeline_mode<synchronous>, transform_indices = @transform_4, window_bounds = array<i64: 1, 128>}, {pipeline_mode = #tpu.pipeline_mode<synchronous>, transform_indices = @transform_5, window_bounds = array<i64: 128, 8>}, {pipeline_mode = #tpu.pipeline_mode<synchronous>, transform_indices = @transform_6, window_bounds = array<i64: 1, 8>}, {transform_indices = @transform_7, window_bounds = array<i64: 8, 8>}]} {
    %c0 = arith.constant 0 : index
    %c0_0 = arith.constant 0 : index
    %0 = vector.load %arg1[%c0, %c0_0] : memref<8x16xf32, #tpu.memory_space<vmem>>, vector<8x16xf32>
    %1 = arith.truncf %0 : vector<8x16xf32> to vector<8x16xbf16>
    %c0_1 = arith.constant 0 : index
    %c0_2 = arith.constant 0 : index
    %2 = vector.load %arg2[%c0_1, %c0_2] : memref<16x128xbf16, #tpu.memory_space<vmem>>, vector<16x128xbf16>
    %cst = arith.constant dense<0.000000e+00> : vector<8x128xf32>
    %3 = tpu.matmul %1, %2, %cst {dimension_numbers = #tpu.dot_dimension_numbers<[1], [0], [0], [1], [0, 0, 1, 1], [], []>} : vector<8x16xbf16>, vector<16x128xbf16>, vector<8x128xf32> -> vector<8x128xf32>
    %c0_3 = arith.constant 0 : index
    %c0_4 = arith.constant 0 : index
    %4 = vector.load %arg3[%c0_3, %c0_4] : memref<1x128xf32, #tpu.memory_space<vmem>>, vector<1x128xf32>
    %5 = vector.broadcast %4 : vector<1x128xf32> to vector<8x128xf32>
    %6 = arith.addf %3, %5 : vector<8x128xf32>
    %cst_5 = arith.constant 0.000000e+00 : f32
    %7 = vector.broadcast %cst_5 : f32 to vector<8x128xf32>
    %8 = arith.maximumf %6, %7 : vector<8x128xf32>
    %9 = arith.truncf %8 : vector<8x128xf32> to vector<8x128xbf16>
    %c0_6 = arith.constant 0 : index
    %c0_7 = arith.constant 0 : index
    %10 = vector.load %arg4[%c0_6, %c0_7] : memref<128x128xbf16, #tpu.memory_space<vmem>>, vector<128x128xbf16>
    %cst_8 = arith.constant dense<0.000000e+00> : vector<8x128xf32>
    %11 = tpu.matmul %9, %10, %cst_8 {dimension_numbers = #tpu.dot_dimension_numbers<[1], [0], [0], [1], [0, 0, 1, 1], [], []>} : vector<8x128xbf16>, vector<128x128xbf16>, vector<8x128xf32> -> vector<8x128xf32>
    %c0_9 = arith.constant 0 : index
    %c0_10 = arith.constant 0 : index
    %12 = vector.load %arg5[%c0_9, %c0_10] : memref<1x128xf32, #tpu.memory_space<vmem>>, vector<1x128xf32>
    %13 = vector.broadcast %12 : vector<1x128xf32> to vector<8x128xf32>
    %14 = arith.addf %11, %13 : vector<8x128xf32>
    %cst_11 = arith.constant 0.000000e+00 : f32
    %15 = vector.broadcast %cst_11 : f32 to vector<8x128xf32>
    %16 = arith.maximumf %14, %15 : vector<8x128xf32>
    %17 = arith.truncf %16 : vector<8x128xf32> to vector<8x128xbf16>
    %c0_12 = arith.constant 0 : index
    %c0_13 = arith.constant 0 : index
    %18 = vector.load %arg6[%c0_12, %c0_13] : memref<128x8xbf16, #tpu.memory_space<vmem>>, vector<128x8xbf16>
    %cst_14 = arith.constant dense<0.000000e+00> : vector<8x8xf32>
    %19 = tpu.matmul %17, %18, %cst_14 {dimension_numbers = #tpu.dot_dimension_numbers<[1], [0], [0], [1], [0, 0, 1, 1], [], []>} : vector<8x128xbf16>, vector<128x8xbf16>, vector<8x8xf32> -> vector<8x8xf32>
    %c0_15 = arith.constant 0 : index
    %c0_16 = arith.constant 0 : index
    %20 = vector.load %arg7[%c0_15, %c0_16] : memref<1x8xf32, #tpu.memory_space<vmem>>, vector<1x8xf32>
    %21 = vector.broadcast %20 : vector<1x8xf32> to vector<8x8xf32>
    %22 = arith.addf %19, %21 : vector<8x8xf32>
    %c0_17 = arith.constant 0 : index
    %c0_18 = arith.constant 0 : index
    %23 = vector.load %arg8[%c0_17, %c0_18] : memref<8x8xf32, #tpu.memory_space<vmem>>, vector<8x8xf32>
    tpu.vector_store %arg8[%c0_17, %c0_18], %22 {strides = array<i32>} : memref<8x8xf32, #tpu.memory_space<vmem>>, vector<8x8xf32>,
    return
  }
  func.func @transform_0(%arg0: i32) -> (i32, i32) {
    %c0_i32 = arith.constant 0 : i32
    %c0_i32_0 = arith.constant 0 : i32
    return %arg0, %c0_i32 : i32, i32
  }
  func.func @transform_1(%arg0: i32) -> (i32, i32) {
    %c0_i32 = arith.constant 0 : i32
    %c0_i32_0 = arith.constant 0 : i32
    %c0_i32_1 = arith.constant 0 : i32
    return %c0_i32, %c0_i32_0 : i32, i32
  }
  func.func @transform_2(%arg0: i32) -> (i32, i32) {
    %c0_i32 = arith.constant 0 : i32
    %c0_i32_0 = arith.constant 0 : i32
    %c0_i32_1 = arith.constant 0 : i32
    return %c0_i32, %c0_i32_0 : i32, i32
  }
  func.func @transform_3(%arg0: i32) -> (i32, i32) {
    %c0_i32 = arith.constant 0 : i32
    %c0_i32_0 = arith.constant 0 : i32
    %c0_i32_1 = arith.constant 0 : i32
    return %c0_i32, %c0_i32_0 : i32, i32
  }
  func.func @transform_4(%arg0: i32) -> (i32, i32) {
    %c0_i32 = arith.constant 0 : i32
    %c0_i32_0 = arith.constant 0 : i32
    %c0_i32_1 = arith.constant 0 : i32
    return %c0_i32, %c0_i32_0 : i32, i32
  }
  func.func @transform_5(%arg0: i32) -> (i32, i32) {
    %c0_i32 = arith.constant 0 : i32
    %c0_i32_0 = arith.constant 0 : i32
    %c0_i32_1 = arith.constant 0 : i32
    return %c0_i32, %c0_i32_0 : i32, i32
  }
  func.func @transform_6(%arg0: i32) -> (i32, i32) {
    %c0_i32 = arith.constant 0 : i32
    %c0_i32_0 = arith.constant 0 : i32
    %c0_i32_1 = arith.constant 0 : i32
    return %c0_i32, %c0_i32_0 : i32, i32
  }
  func.func @transform_7(%arg0: i32) -> (i32, i32) {
    %c0_i32 = arith.constant 0 : i32
    %c0_i32_0 = arith.constant 0 : i32
    return %arg0, %c0_i32 : i32, i32
  }
}

</mosaic_0001>

<llo_original>
// kernel: _forward_impl.1
$region0: #{_forward_impl.1}
  #allocation0 [shape = 'u32[]', space=smem, size = 0x4, offset = 0x4, fixed_abs, tag = 'smem constant byte address 0x4 - core index']
  #allocation1 [shape = 'u32[144,128]{1,0:T(1,128)}', space=vmem, size = 0x12000, scoped, tag = 'internal scratch']
  %s0 = inlined_call_operand.vmem [shape: f32[8,16], index: 0, kind: input, shape index: {}]
  %s1 = inlined_call_operand.hbm [shape: bf16[16,128], index: 1, kind: input, shape index: {}]
  %s2 = inlined_call_operand.vmem [shape: f32[1,128], index: 2, kind: input, shape index: {}]
  %s3 = inlined_call_operand.vmem [shape: bf16[128,128], index: 3, kind: input, shape index: {}]
  %s4 = inlined_call_operand.vmem [shape: f32[1,128], index: 4, kind: input, shape index: {}]
  %s5 = inlined_call_operand.vmem [shape: bf16[128,8], index: 5, kind: input, shape index: {}]
  %s6 = inlined_call_operand.vmem [shape: f32[1,8], index: 6, kind: input, shape index: {}]
  %s7 = inlined_call_operand.hbm [shape: f32[8,8], index: 7, kind: output, shape index: {}]
  %s8 = sld [smem:[#allocation0]]
  $region42: #{_forward_impl.1} parent=0
    _
  %s10 = ssub.s32 1, %s8
  %s11 = scalar_select 0, %s10, %s8
  $region1: #{_forward_impl.1} parent=0
    #allocation2 [shape = 'u8[4096]{0}', space=vmem, size = 0x1000, scoped, tag = 'input window, operand 1, single buffered']
    #allocation3 [shape = 's32[1]{0}', space=sflag, size = 0x4, scoped, tag = 'scoped memory for _forward_impl.1']
    #allocation4 [shape = 's32[1]{0}', space=sflag, size = 0x4, scoped, tag = 'scoped memory for _forward_impl.1']
    #allocation5 [shape = 'u8[4096]{0}', space=vmem, size = 0x1000, scoped, tag = 'output window, operand 0, single buffered']
    %12 = vsyncpa [#allocation3], 0
    %13 = vsyncpa [#allocation4], 0
    // Predicated region
    $region2: #{_forward_impl.1} parent=1 // pred_check
      _
    $region3: #{_forward_impl.1} parent=1 // pred_check_branch
      %15 = sbr.rel (0) target = $region5
    $region4: #{_forward_impl.1} parent=1 // pred_region
      _
    $region5: #{_forward_impl.1} parent=1 // pred_fallthru
      _
    // Predicated region
    $region6: #{_forward_impl.1} parent=1 // pred_check
      _
    $region7: #{_forward_impl.1} parent=1 // pred_check_branch
      %17 = sbr.rel (0) target = $region9
    $region8: #{_forward_impl.1} parent=1 // pred_region
      %s19 = ssub.s32 128, 128
      %20 = vsyncadd [#allocation3], %s19
      %s21 = sshll.u32 [#allocation2], 4
      %s22 = int_to_ptr.vmem [resolvable:$true] %s21
      %27 = dma.hbm_to_vmem [thread:$0]  %s1, 128, %s22, [#allocation3], 64, 64, 4
    $region9: #{_forward_impl.1} parent=1 // pred_fallthru
      _
    // Predicated region
    $region10: #{_forward_impl.1} parent=1 // pred_check
      _
    $region11: #{_forward_impl.1} parent=1 // pred_check_branch
      %29 = sbr.rel (0) target = $region13
    $region12: #{_forward_impl.1} parent=1 // pred_region
      _
    $region13: #{_forward_impl.1} parent=1 // pred_fallthru
      _
    // Predicated region
    $region14: #{_forward_impl.1} parent=1 // pred_check
      _
    $region15: #{_forward_impl.1} parent=1 // pred_check_branch
      %31 = sbr.rel (0) target = $region17
    $region16: #{_forward_impl.1} parent=1 // pred_region
      _
    $region17: #{_forward_impl.1} parent=1 // pred_fallthru
      _
    // Predicated region
    $region18: #{_forward_impl.1} parent=1 // pred_check
      _
    $region19: #{_forward_impl.1} parent=1 // pred_check_branch
      %33 = sbr.rel (0) target = $region21
    $region20: #{_forward_impl.1} parent=1 // pred_region
      _
    $region21: #{_forward_impl.1} parent=1 // pred_fallthru
      _
    // Predicated region
    $region22: #{_forward_impl.1} parent=1 // pred_check
      _
    $region23: #{_forward_impl.1} parent=1 // pred_check_branch
      %35 = sbr.rel (0) target = $region25
    $region24: #{_forward_impl.1} parent=1 // pred_region
      _
    $region25: #{_forward_impl.1} parent=1 // pred_fallthru
      _
    // Predicated region
    $region26: #{_forward_impl.1} parent=1 // pred_check
      _
    $region27: #{_forward_impl.1} parent=1 // pred_check_branch
      %37 = sbr.rel (0) target = $region29
    $region28: #{_forward_impl.1} parent=1 // pred_region
      _
    $region29: #{_forward_impl.1} parent=1 // pred_fallthru
      _
    // Predicated region
    $region30: #{_forward_impl.1} parent=1 // pred_check
      _
    $region31: #{_forward_impl.1} parent=1 // pred_check_branch
      %39 = sbr.rel (0) target = $region33
    $region32: #{_forward_impl.1} parent=1 // pred_region
      %40 = dma.done [#allocation3], 128
    $region33: #{_forward_impl.1} parent=1 // pred_fallthru
      _
    %v42 = vld [vmem:[%s0] sm:$0xff]
    %v43 = vpack.c.bf16 %v42, %v42
    %v44 = vld [vmem:[#allocation2] sm:$0xf]
    %v45 = vld [vmem:[#allocation2 + $0x4] sm:$0xf]
    %v46 = vld [vmem:[%s2] sm:$0x1]
    %v48 = vlaneseq
    %v49 = vshrl.u32 %v48, 7
    %v50 = vsub.s32 0, %v49
    %v51 = vrot.slane %v46, %v50
    %v55 = vunpack.c.l.b16 %v44
    %v56 = vunpack.c.l.b16 %v45
    %v57 = vpack.c.b16 %v56, %v55
    %vm59 = vcmask 130048
    %v61 = vsel %vm59, %v43, 0
    %63 = vmatprep.subr.bf16.mxu0 0
    %64 = vmatpush1.bf16.msra.mxu0 %v57
    %65 = vmatprep.subr.bf16.mxu0 0
    %66 = vmatpush1.bf16.msra.mxu0 0
    %67 = vmatprep.subr.bf16.mxu0 0
    %68 = vmatpush1.bf16.msra.mxu0 0
    %69 = vmatprep.subr.bf16.mxu0 0
    %70 = vmatpush1.bf16.msra.mxu0 0
    %71 = vmatprep.subr.bf16.mxu0 0
    %72 = vmatpush1.bf16.msra.mxu0 0
    %73 = vmatprep.subr.bf16.mxu0 0
    %74 = vmatpush1.bf16.msra.mxu0 0
    %75 = vmatprep.subr.bf16.mxu0 0
    %76 = vmatpush1.bf16.msra.mxu0 0
    %77 = vmatprep.subr.bf16.mxu0 0
    %78 = vmatpush1.bf16.msra.mxu0 0
    %79 = vmatprep.subr.bf16.mxu0 0
    %80 = vmatpush1.bf16.msra.mxu0 0
    %81 = vmatprep.subr.bf16.mxu0 0
    %82 = vmatpush1.bf16.msra.mxu0 0
    %83 = vmatprep.subr.bf16.mxu0 0
    %84 = vmatpush1.bf16.msra.mxu0 0
    %85 = vmatprep.subr.bf16.mxu0 0
    %86 = vmatpush1.bf16.msra.mxu0 0
    %87 = vmatprep.subr.bf16.mxu0 0
    %88 = vmatpush1.bf16.msra.mxu0 0
    %89 = vmatprep.subr.bf16.mxu0 0
    %90 = vmatpush1.bf16.msra.mxu0 0
    %91 = vmatprep.subr.bf16.mxu0 0
    %92 = vmatpush1.bf16.msra.mxu0 0
    %93 = vmatprep.subr.bf16.mxu0 0
    %94 = vmatpush1.bf16.msra.mxu0 0
    %95 = vmatprep.mubr.bf16.mxu0 0
    %96 = vmatmul.mubr.bf16.gmra.mrb[0].mxu0 %v61
    %v97 = vpop.f32.mrb[0].mxu0
    %v98 = vadd.f32 %v51, %v97
    %v99 = vpop.f32.mrb[0].mxu0
    %v100 = vpop.f32.mrb[0].mxu0
    %v101 = vpop.f32.mrb[0].mxu0
    %102 = vdwg.mxu0
    %v103 = vmax.f32 %v98, 0.0
    %v104 = vpack.c.bf16 %v103, %v103
    %v105 = vld [vmem:[%s3] sm:$0xf]
    %v106 = vld [vmem:[%s3 + $0x4] sm:$0xf]
    %v107 = vld [vmem:[%s3 + $0x8] sm:$0xf]
    %v108 = vld [vmem:[%s3 + $0xc] sm:$0xf]
    %v109 = vld [vmem:[%s3 + $0x10] sm:$0xf]
    %v110 = vld [vmem:[%s3 + $0x14] sm:$0xf]
    %v111 = vld [vmem:[%s3 + $0x18] sm:$0xf]
    %v112 = vld [vmem:[%s3 + $0x1c] sm:$0xf]
    %v113 = vld [vmem:[%s3 + $0x20] sm:$0xf]
    %v114 = vld [vmem:[%s3 + $0x24] sm:$0xf]
    %v115 = vld [vmem:[%s3 + $0x28] sm:$0xf]
    %v116 = vld [vmem:[%s3 + $0x2c] sm:$0xf]
    %v117 = vld [vmem:[%s3 + $0x30] sm:$0xf]
    %v118 = vld [vmem:[%s3 + $0x34] sm:$0xf]
    %v119 = vld [vmem:[%s3 + $0x38] sm:$0xf]
    %v120 = vld [vmem:[%s3 + $0x3c] sm:$0xf]
    %v121 = vld [vmem:[%s4] sm:$0x1]
    %v123 = vlaneseq
    %v124 = vshrl.u32 %v123, 7
    %v125 = vsub.s32 0, %v124
    %v126 = vrot.slane %v121, %v125
    %v144 = vunpack.c.l.b16 %v105
    %v145 = vunpack.c.l.b16 %v106
    %v146 = vunpack.c.l.b16 %v107
    %v147 = vunpack.c.l.b16 %v108
    %v148 = vunpack.c.l.b16 %v109
    %v149 = vunpack.c.l.b16 %v110
    %v150 = vunpack.c.l.b16 %v111
    %v151 = vunpack.c.l.b16 %v112
    %v152 = vunpack.c.l.b16 %v113
    %v153 = vunpack.c.l.b16 %v114
    %v154 = vunpack.c.l.b16 %v115
    %v155 = vunpack.c.l.b16 %v116
    %v156 = vunpack.c.l.b16 %v117
    %v157 = vunpack.c.l.b16 %v118
    %v158 = vunpack.c.l.b16 %v119
    %v159 = vunpack.c.l.b16 %v120
    %v160 = vpack.c.b16 %v145, %v144
    %v161 = vpack.c.b16 %v147, %v146
    %v162 = vpack.c.b16 %v149, %v148
    %v163 = vpack.c.b16 %v151, %v150
    %v164 = vpack.c.b16 %v153, %v152
    %v165 = vpack.c.b16 %v155, %v154
    %v166 = vpack.c.b16 %v157, %v156
    %v167 = vpack.c.b16 %v159, %v158
    %176 = vmatprep.subr.bf16.mxu0 0
    %177 = vmatpush1.bf16.msra.mxu0 %v160
    %178 = vmatprep.subr.bf16.mxu0 0
    %179 = vmatpush1.bf16.msra.mxu0 %v161
    %180 = vmatprep.subr.bf16.mxu0 0
    %181 = vmatpush1.bf16.msra.mxu0 %v162
    %182 = vmatprep.subr.bf16.mxu0 0
    %183 = vmatpush1.bf16.msra.mxu0 %v163
    %184 = vmatprep.subr.bf16.mxu0 0
    %185 = vmatpush1.bf16.msra.mxu0 %v164
    %186 = vmatprep.subr.bf16.mxu0 0
    %187 = vmatpush1.bf16.msra.mxu0 %v165
    %188 = vmatprep.subr.bf16.mxu0 0
    %189 = vmatpush1.bf16.msra.mxu0 %v166
    %190 = vmatprep.subr.bf16.mxu0 0
    %191 = vmatpush1.bf16.msra.mxu0 %v167
    %192 = vmatprep.subr.bf16.mxu0 0
    %193 = vmatpush1.bf16.msra.mxu0 0
    %194 = vmatprep.subr.bf16.mxu0 0
    %195 = vmatpush1.bf16.msra.mxu0 0
    %196 = vmatprep.subr.bf16.mxu0 0
    %197 = vmatpush1.bf16.msra.mxu0 0
    %198 = vmatprep.subr.bf16.mxu0 0
    %199 = vmatpush1.bf16.msra.mxu0 0
    %200 = vmatprep.subr.bf16.mxu0 0
    %201 = vmatpush1.bf16.msra.mxu0 0
    %202 = vmatprep.subr.bf16.mxu0 0
    %203 = vmatpush1.bf16.msra.mxu0 0
    %204 = vmatprep.subr.bf16.mxu0 0
    %205 = vmatpush1.bf16.msra.mxu0 0
    %206 = vmatprep.subr.bf16.mxu0 0
    %207 = vmatpush1.bf16.msra.mxu0 0
    %208 = vmatprep.mubr.bf16.mxu0 0
    %209 = vmatmul.mubr.bf16.gmra.mrb[0].mxu0 %v104
    %v210 = vpop.f32.mrb[0].mxu0
    %v211 = vadd.f32 %v126, %v210
    %v212 = vpop.f32.mrb[0].mxu0
    %v213 = vpop.f32.mrb[0].mxu0
    %v214 = vpop.f32.mrb[0].mxu0
    %215 = vdwg.mxu0
    %v216 = vmax.f32 %v211, 0.0
    %v217 = vpack.c.bf16 %v216, %v216
    %v218 = vld [vmem:[%s5] sm:$0xf]
    %v219 = vld [vmem:[%s5 + $0x4] sm:$0xf]
    %v220 = vld [vmem:[%s5 + $0x8] sm:$0xf]
    %v221 = vld [vmem:[%s5 + $0xc] sm:$0xf]
    %v222 = vld [vmem:[%s5 + $0x10] sm:$0xf]
    %v223 = vld [vmem:[%s5 + $0x14] sm:$0xf]
    %v224 = vld [vmem:[%s5 + $0x18] sm:$0xf]
    %v225 = vld [vmem:[%s5 + $0x1c] sm:$0xf]
    %v226 = vld [vmem:[%s5 + $0x20] sm:$0xf]
    %v227 = vld [vmem:[%s5 + $0x24] sm:$0xf]
    %v228 = vld [vmem:[%s5 + $0x28] sm:$0xf]
    %v229 = vld [vmem:[%s5 + $0x2c] sm:$0xf]
    %v230 = vld [vmem:[%s5 + $0x30] sm:$0xf]
    %v231 = vld [vmem:[%s5 + $0x34] sm:$0xf]
    %v232 = vld [vmem:[%s5 + $0x38] sm:$0xf]
    %v233 = vld [vmem:[%s5 + $0x3c] sm:$0xf]
    %v234 = vld [vmem:[%s6] sm:$0x1]
    %v236 = vlaneseq
    %v237 = vshrl.u32 %v236, 7
    %v238 = vsub.s32 0, %v237
    %v239 = vrot.slane %v234, %v238
    %v257 = vunpack.c.l.b16 %v218
    %v258 = vunpack.c.l.b16 %v219
    %v259 = vunpack.c.l.b16 %v220
    %v260 = vunpack.c.l.b16 %v221
    %v261 = vunpack.c.l.b16 %v222
    %v262 = vunpack.c.l.b16 %v223
    %v263 = vunpack.c.l.b16 %v224
    %v264 = vunpack.c.l.b16 %v225
    %v265 = vunpack.c.l.b16 %v226
    %v266 = vunpack.c.l.b16 %v227
    %v267 = vunpack.c.l.b16 %v228
    %v268 = vunpack.c.l.b16 %v229
    %v269 = vunpack.c.l.b16 %v230
    %v270 = vunpack.c.l.b16 %v231
    %v271 = vunpack.c.l.b16 %v232
    %v272 = vunpack.c.l.b16 %v233
    %v273 = vpack.c.b16 %v258, %v257
    %v274 = vpack.c.b16 %v260, %v259
    %v275 = vpack.c.b16 %v262, %v261
    %v276 = vpack.c.b16 %v264, %v263
    %v277 = vpack.c.b16 %v266, %v265
    %v278 = vpack.c.b16 %v268, %v267
    %v279 = vpack.c.b16 %v270, %v269
    %v280 = vpack.c.b16 %v272, %v271
    %289 = vmatprep.subr.bf16.mxu0 0
    %290 = vmatpush1.bf16.msra.mxu0 %v273
    %291 = vmatprep.subr.bf16.mxu0 0
    %292 = vmatpush1.bf16.msra.mxu0 %v274
    %293 = vmatprep.subr.bf16.mxu0 0
    %294 = vmatpush1.bf16.msra.mxu0 %v275
    %295 = vmatprep.subr.bf16.mxu0 0
    %296 = vmatpush1.bf16.msra.mxu0 %v276
    %297 = vmatprep.subr.bf16.mxu0 0
    %298 = vmatpush1.bf16.msra.mxu0 %v277
    %299 = vmatprep.subr.bf16.mxu0 0
    %300 = vmatpush1.bf16.msra.mxu0 %v278
    %301 = vmatprep.subr.bf16.mxu0 0
    %302 = vmatpush1.bf16.msra.mxu0 %v279
    %303 = vmatprep.subr.bf16.mxu0 0
    %304 = vmatpush1.bf16.msra.mxu0 %v280
    %305 = vmatprep.subr.bf16.mxu0 0
    %306 = vmatpush1.bf16.msra.mxu0 0
    %307 = vmatprep.subr.bf16.mxu0 0
    %308 = vmatpush1.bf16.msra.mxu0 0
    %309 = vmatprep.subr.bf16.mxu0 0
    %310 = vmatpush1.bf16.msra.mxu0 0
    %311 = vmatprep.subr.bf16.mxu0 0
    %312 = vmatpush1.bf16.msra.mxu0 0
    %313 = vmatprep.subr.bf16.mxu0 0
    %314 = vmatpush1.bf16.msra.mxu0 0
    %315 = vmatprep.subr.bf16.mxu0 0
    %316 = vmatpush1.bf16.msra.mxu0 0
    %317 = vmatprep.subr.bf16.mxu0 0
    %318 = vmatpush1.bf16.msra.mxu0 0
    %319 = vmatprep.subr.bf16.mxu0 0
    %320 = vmatpush1.bf16.msra.mxu0 0
    %321 = vmatprep.mubr.bf16.mxu0 0
    %322 = vmatmul.mubr.bf16.gmra.mrb[0].mxu0 %v217
    %v323 = vpop.f32.mrb[0].mxu0
    %v324 = vadd.f32 %v239, %v323
    %v325 = vpop.f32.mrb[0].mxu0
    %v326 = vpop.f32.mrb[0].mxu0
    %v327 = vpop.f32.mrb[0].mxu0
    %328 = vdwg.mxu0
    %vm329 = vcmask 64512
    %330 = vst.msk [vmem:[#allocation5] sm:$0xff] %vm329, %v324
    // Predicated region
    $region34: #{_forward_impl.1} parent=1 // pred_check
      _
    $region35: #{_forward_impl.1} parent=1 // pred_check_branch
      %332 = sbr.rel (0) target = $region37
    $region36: #{_forward_impl.1} parent=1 // pred_region
      %s334 = ssub.s32 128, 128
      %335 = vsyncadd [#allocation4], %s334
      %s337 = sshll.u32 [#allocation5], 4
      %s338 = int_to_ptr.vmem [resolvable:$true] %s337
      %340 = dma.vmem_to_hbm [thread:$0]  %s338, 128, %s7, [#allocation4]
    $region37: #{_forward_impl.1} parent=1 // pred_fallthru
      _
    // Predicated region
    $region38: #{_forward_impl.1} parent=1 // pred_check
      _
    $region39: #{_forward_impl.1} parent=1 // pred_check_branch
      %342 = sbr.rel (0) target = $region41
    $region40: #{_forward_impl.1} parent=1 // pred_region
      %343 = dma.done [#allocation4], 128
    $region41: #{_forward_impl.1} parent=1 // pred_fallthru
      _
    %344 = vsyncpa [#allocation3], 1
    %345 = vsyncpa [#allocation4], 1

</llo_original>
